<compile_context>
chip_gen: v7x
topology: tpu7x:2x2x1
jax: 0.10.0
libtpu: 0.0.40
codegen_flags: <defaults>
</compile_context>

<pallas_src>
import functools

import jax
import jax.numpy as jnp
from jax.experimental import pallas as pl
from jax.experimental.pallas import tpu as pltpu


def _round_up(x, m):
    return ((x + m - 1) // m) * m


# ----------------------------------------------------------------------------
# Generation-aware VMEM budgets and feature probes.
# ----------------------------------------------------------------------------
@functools.lru_cache(maxsize=None)
def _vmem_capacity_bytes():
    try:
        return int(pltpu.get_tpu_info().vmem_capacity_bytes)
    except Exception:
        return 64 * 1024 * 1024            # conservative (v7x per-TC VMEM)


@functools.lru_cache(maxsize=None)
def _budgets():
    """(fused_budget, vmem_limit, multi_tc)."""
    phys = _vmem_capacity_bytes()
    vmem_limit = min((phys * 3) // 4, 100 * 1024 * 1024)   # ~48 MiB v7x, ~96 MiB v5e/v6e
    fused_budget = phys // 2                                 # ~32 MiB v7x, ~64 MiB v5e/v6e
    multi_tc = phys <= 64 * 1024 * 1024                      # v7x heuristic: 2 TCs/chip
    return fused_budget, vmem_limit, multi_tc


@functools.lru_cache(maxsize=None)
def _single_buffer_supported():
    """Probe whether pl.Buffered(1) (single-buffered resident inputs) lowers."""
    try:
        def k(x_ref, o_ref):
            o_ref[...] = x_ref[...]
        f = pl.pallas_call(
            k,
            out_shape=jax.ShapeDtypeStruct((8, 128), jnp.float32),
            grid=(2,),
            in_specs=[pl.BlockSpec((8, 128), lambda i: (0, 0),
                                   pipeline_mode=pl.Buffered(1))],
            out_specs=pl.BlockSpec((8, 128), lambda i: (0, 0)),
        )
        jax.jit(f).lower(jax.ShapeDtypeStruct((8, 128), jnp.float32)).compile()
        return True
    except Exception:
        return False


_TM_CAP = 1024        # batch-tile cap for the fused path


# ----------------------------------------------------------------------------
# Fused whole-MLP kernel: weights VMEM-resident, grid only over batch tiles.
# refs = (x_ref, w0, b0, w1, b1, ..., o_ref); layer count inferred from arity.
# ----------------------------------------------------------------------------
def _fused_mlp_kernel(x_ref, *rest):
    o_ref = rest[-1]
    wb = rest[:-1]
    n_layers = len(wb) // 2
    # Activations carried in f32 for f32 weights, bf16 otherwise.
    cdt = jnp.float32 if jnp.dtype(wb[0].dtype).itemsize >= 4 else jnp.bfloat16
    h = x_ref[...].astype(cdt)
    for l in range(n_layers):                     # unrolled at trace time
        w = wb[2 * l][...]
        if jnp.dtype(w.dtype) != jnp.dtype(cdt):
            w = w.astype(cdt)
        b = wb[2 * l + 1][...]
        y = jnp.dot(h, w, preferred_element_type=jnp.float32)
        y = y + b.astype(jnp.float32)             # (tm, N) + (1, N), f32 epilogue
        h = jnp.maximum(y, 0.0)                   # ReLU after every layer (module spec)
        if l + 1 < n_layers:
            h = h.astype(cdt)                     # halve live bytes between layers
    o_ref[...] = h.astype(o_ref.dtype)


def _fused_plan(m, prepped):
    """Pick batch tile tm, VMEM-byte estimate, and whether the fused path fits."""
    fused_budget, _, multi_tc = _budgets()
    sb = 1 if _single_buffer_supported() else 2   # residents single/double buffered
    k_in = prepped[0][0].shape[0]
    n_out = prepped[-1][0].shape[1]
    csz = jnp.dtype(prepped[0][0].dtype).itemsize

    wb_bytes = sum(sb * (w.size * w.dtype.itemsize + b.size * b.dtype.itemsize)
                   for w, b in prepped)

    def est_for(tm):
        e = wb_bytes
        e += 2 * tm * k_in * 4                    # x blocks (double-buffered, f32)
        e += 2 * tm * n_out * 4                   # out blocks (double-buffered)
        e += tm * k_in * csz                      # cast copy of x
        for w, _ in prepped:                      # per-layer live intermediates
            nl = w.shape[1]
            e += tm * nl * (4 + csz)              # f32 y + compute-dtype h
        e += 2 * 1024 * 1024                      # compiler-internal scratch slack
        return int(e)

    if m <= 8:
        tm = max(m, 1)
    else:
        tm = min(_TM_CAP, _round_up(m, 8))
        while tm > 8 and est_for(tm) > fused_budget:
            tm = max(8, _round_up(tm // 2, 8))
        # Keep >= 2 batch grid steps on 2-TensorCore parts (v7x).
        if multi_tc and m >= 16 and pl.cdiv(m, tm) < 2:
            tm = max(8, _round_up(pl.cdiv(m, 2), 8))
    est = est_for(tm)
    return tm, est, est <= fused_budget


def _fused_mlp(x, prepped, tm, est, out_dtype):
    m, k_in = x.shape
    n_out = prepped[-1][0].shape[1]
    _, vmem_cap, _ = _budgets()
    grid_m = pl.cdiv(m, tm)                       # ragged last block: masked by Pallas

    resident = pl.Buffered(1) if _single_buffer_supported() else None

    in_specs = [pl.BlockSpec((tm, k_in), lambda i: (i, 0))]
    inputs = [x]
    flops = 0
    bytes_accessed = (m * k_in * x.dtype.itemsize
                      + m * n_out * jnp.dtype(out_dtype).itemsize)
    for w_t, b2 in prepped:
        kl, nl = w_t.shape
        if resident is not None:
            in_specs.append(pl.BlockSpec((kl, nl), lambda i: (0, 0),
                                         pipeline_mode=resident))
            in_specs.append(pl.BlockSpec((1, nl), lambda i: (0, 0),
                                         pipeline_mode=resident))
        else:
            in_specs.append(pl.BlockSpec((kl, nl), lambda i: (0, 0)))
            in_specs.append(pl.BlockSpec((1, nl), lambda i: (0, 0)))
        inputs += [w_t, b2]
        flops += 2 * m * kl * nl
        bytes_accessed += w_t.size * w_t.dtype.itemsize + b2.size * b2.dtype.itemsize

    vmem_limit = int(min(max(est + est // 2, 32 * 1024 * 1024), vmem_cap))

    return pl.pallas_call(
        _fused_mlp_kernel,
        out_shape=jax.ShapeDtypeStruct((m, n_out), out_dtype),
        grid_spec=pltpu.PrefetchScalarGridSpec(
            num_scalar_prefetch=0,
            grid=(grid_m,),
            in_specs=in_specs,
            out_specs=pl.BlockSpec((tm, n_out), lambda i: (i, 0)),
        ),
        compiler_params=pltpu.CompilerParams(
            dimension_semantics=("parallel",),
            vmem_limit_bytes=vmem_limit,
        ),
        cost_estimate=pl.CostEstimate(
            flops=int(flops), transcendentals=0,
            bytes_accessed=int(bytes_accessed)),
    )(*inputs)


# ----------------------------------------------------------------------------
# Fallback: per-layer tiled fused Linear+ReLU (layers too large for residency).
# Output-stationary accumulation over K; bias+ReLU epilogue in f32.
# ----------------------------------------------------------------------------
def _linear_relu_kernel(x_ref, w_ref, b_ref, o_ref, acc_ref):
    k = pl.program_id(2)

    @pl.when(k == 0)
    def _():
        acc_ref[...] = jnp.zeros_like(acc_ref)

    w = w_ref[...]
    acc_ref[...] += jnp.dot(x_ref[...].astype(w.dtype), w,
                            preferred_element_type=jnp.float32)

    @pl.when(k == pl.num_programs(2) - 1)
    def _():
        y = acc_ref[...] + b_ref[...].astype(jnp.float32)
        o_ref[...] = jnp.maximum(y, 0.0).astype(o_ref.dtype)


def _pick_divisor_tile(dim, cap):
    t = cap
    while t >= 128:
        if dim % t == 0:
            return t
        t //= 2
    return None


def _linear_relu_tiled(x, w_t, b2, out_dtype, tm, feat_cap, vmem_limit):
    m, k = x.shape
    kw, n = w_t.shape
    assert k == kw

    # K (reduction) tiling: full-dim, a divisor of K, or (rarely) zero-pad K.
    if k <= feat_cap:
        tk = k
    else:
        tk = _pick_divisor_tile(k, feat_cap)
        if tk is None:
            # TODO(synk): pre-pad K at prepare time to avoid this per-call copy.
            kp = _round_up(k, feat_cap)
            x = jnp.zeros((m, kp), x.dtype).at[:, :k].set(x)
            w_t = jnp.zeros((kp, n), w_t.dtype).at[:k, :].set(w_t)
            k, tk = kp, feat_cap

    # N tiling: full-dim or feat_cap with a ragged (masked) last block.
    tn = n if n <= feat_cap else feat_cap

    grid = (pl.cdiv(m, tm), pl.cdiv(n, tn), k // tk)

    return pl.pallas_call(
        _linear_relu_kernel,
        out_shape=jax.ShapeDtypeStruct((m, n), out_dtype),
        grid_spec=pltpu.PrefetchScalarGridSpec(
            num_scalar_prefetch=0,
            grid=grid,
            in_specs=[
                pl.BlockSpec((tm, tk), lambda i, j, kk: (i, kk)),   # x tile
                pl.BlockSpec((tk, tn), lambda i, j, kk: (kk, j)),   # W tile
                pl.BlockSpec((1, tn), lambda i, j, kk: (0, j)),     # bias tile
            ],
            out_specs=pl.BlockSpec((tm, tn), lambda i, j, kk: (i, j)),
            scratch_shapes=[pltpu.VMEM((tm, tn), jnp.float32)],
        ),
        compiler_params=pltpu.CompilerParams(
            dimension_semantics=("parallel", "parallel", "arbitrary"),
            vmem_limit_bytes=vmem_limit,
        ),
        cost_estimate=pl.CostEstimate(
            flops=2 * m * n * k,
            transcendentals=0,
            bytes_accessed=int(grid[1] * m * k * x.dtype.itemsize
                               + grid[0] * k * n * w_t.dtype.itemsize
                               + n * 4 + m * n * jnp.dtype(out_dtype).itemsize)),
    )(x, w_t, b2)


def _mlp_tiled_fallback(x, prepped, out_dtype):
    _, vmem_limit, multi_tc = _budgets()
    feat_cap = 512 if multi_tc else 1024          # larger tiles on 128 MiB-VMEM parts
    tm_cap = 512 if multi_tc else 1024
    m = x.shape[0]
    if m <= 8:
        tm = max(m, 1)
    else:
        tm = min(tm_cap, _round_up(m, 8))
        if multi_tc and m >= 16 and pl.cdiv(m, tm) < 2:
            tm = max(8, _round_up(pl.cdiv(m, 2), 8))

    # TODO(synk): a single pallas_call keeping the activation batch tile VMEM-
    # resident while streaming each layer's weights via pltpu.emit_pipeline
    # would remove the remaining per-layer HBM activation round trips.
    h = x
    n_layers = len(prepped)
    for l, (w_t, b2) in enumerate(prepped):
        if l == n_layers - 1:
            layer_dtype = out_dtype
        else:
            layer_dtype = (jnp.float32 if jnp.dtype(w_t.dtype).itemsize >= 4
                           else jnp.bfloat16)
        h = _linear_relu_tiled(h, w_t, b2, layer_dtype, tm, feat_cap, vmem_limit)
    return h


# ----------------------------------------------------------------------------
# Parameter init (matches PyTorch _fanin_init / _constant_bias_init) + prep.
# ----------------------------------------------------------------------------
def init_mlp_params(key, input_shape, hidden_shapes):
    """PyTorch Linear weight is (out, in); _fanin_init uses size[0]=out as
    fan_in -> bound = sqrt(1/out).  Bias filled with 0.1."""
    params = []
    in_dim = int(input_shape)
    for next_shape in hidden_shapes:
        key, wkey = jax.random.split(key)
        bound = (1.0 / next_shape) ** 0.5
        w = jax.random.uniform(
            wkey, (next_shape, in_dim), jnp.float32, minval=-bound, maxval=bound)
        b = jnp.full((next_shape,), 0.1, jnp.float32)
        params.append((w, b))
        in_dim = next_shape
    return params


def prepare_mlp_params(params, weight_dtype=jnp.float32):
    """One-time prep: transpose weights to (in, out), reshape bias to (1, N),
    optionally cast weights (bf16 recommended on v6e/v7x for the MXU fast
    path; f32 keeps exact numerics)."""
    prepped = []
    for w, b in params:
        prepped.append((jnp.asarray(w, jnp.float32).T.astype(weight_dtype),
                        jnp.asarray(b, jnp.float32).reshape(1, -1)))
    return tuple(prepped)


@functools.partial(jax.jit, static_argnames=("force_tiled", "out_dtype"))
def mlp_base_forward(x, prepped_params, force_tiled=False, out_dtype=jnp.float32):
    """Forward pass of MLPBase: Linear+ReLU chain (ReLU after last layer too)."""
    prepped_params = tuple(tuple(p) for p in prepped_params)
    tm, est, fits = _fused_plan(x.shape[0], prepped_params)
    if force_tiled or not fits:
        return _mlp_tiled_fallback(x, prepped_params, out_dtype)
    return _fused_mlp(x, prepped_params, tm, est, out_dtype)


def mlp_base_reference(params, x):
    out = x
    for w, b in params:
        out = jnp.maximum(out @ w.T + b, 0.0)
    return out


if __name__ == "__main__":
    key = jax.random.PRNGKey(0)
    batch = 2
    input_dim = 16
    hidden_shapes = [32, 32]

    key, xkey, pkey = jax.random.split(key, 3)
    x = jax.random.normal(xkey, (batch, input_dim), jnp.float32)
    params = init_mlp_params(pkey, input_dim, hidden_shapes)

    # Prime feature probes / budgets outside any trace.
    _budgets()
    _single_buffer_supported()

    ref = mlp_base_reference(params, x)

    # Exact f32 path (single fused pallas_call, weights VMEM-resident).
    prepped_f32 = prepare_mlp_params(params, jnp.float32)
    out = jax.block_until_ready(mlp_base_forward(x, prepped_f32))
    assert out.shape == (batch, hidden_shapes[-1])
    assert jnp.allclose(out, ref, atol=1e-5, rtol=1e-5), "fused f32 mismatch"

    # Ragged / larger batch: no host pad/slice, masked last block.
    xb = jax.random.normal(key, (300, input_dim), jnp.float32)
    refb = mlp_base_reference(params, xb)
    outb = jax.block_until_ready(mlp_base_forward(xb, prepped_f32))
    assert jnp.allclose(outb, refb, atol=1e-5, rtol=1e-5), "fused ragged mismatch"

    # Fallback path (per-layer tiled kernels), exercised explicitly.
    out_t = jax.block_until_ready(mlp_base_forward(x, prepped_f32, force_tiled=True))
    assert jnp.allclose(out_t, ref, atol=1e-5, rtol=1e-5), "tiled fallback mismatch"

    # bf16-weight MXU fast path (recommended default on v6e/v7x); loose check.
    prepped_bf16 = prepare_mlp_params(params, jnp.bfloat16)
    out_bf = jax.block_until_ready(mlp_base_forward(x, prepped_bf16))
    assert jnp.allclose(out_bf, ref, atol=1e-1, rtol=1e-1), "fused bf16 mismatch"

    print("KERNEL_OK")
</pallas_src>

<mosaic_0001>
module attributes {stable_mosaic.version = 11 : i64} {
  func.func @_fused_mlp_kernel(%arg0: i32, %arg1: memref<2x16xf32, #tpu.memory_space<vmem>>, %arg2: memref<16x32xf32, #tpu.memory_space<vmem>>, %arg3: memref<1x32xf32, #tpu.memory_space<vmem>>, %arg4: memref<32x32xf32, #tpu.memory_space<vmem>>, %arg5: memref<1x32xf32, #tpu.memory_space<vmem>>, %arg6: memref<2x32xf32, #tpu.memory_space<vmem>>) attributes {dimension_semantics = [#tpu.dimension_semantics<parallel>], iteration_bounds = array<i64: 1>, scalar_prefetch = 0 : i64, scratch_operands = 0 : i64, tpu.core_type = #tpu.core_type<tc>, window_params = [{transform_indices = @transform_0, window_bounds = array<i64: 2, 16>}, {pipeline_mode = #tpu.pipeline_mode<synchronous>, transform_indices = @transform_1, window_bounds = array<i64: 16, 32>}, {pipeline_mode = #tpu.pipeline_mode<synchronous>, transform_indices = @transform_2, window_bounds = array<i64: 1, 32>}, {pipeline_mode = #tpu.pipeline_mode<synchronous>, transform_indices = @transform_3, window_bounds = array<i64: 32, 32>}, {pipeline_mode = #tpu.pipeline_mode<synchronous>, transform_indices = @transform_4, window_bounds = array<i64: 1, 32>}, {transform_indices = @transform_5, window_bounds = array<i64: 2, 32>}]} {
    %c0 = arith.constant 0 : index
    %c0_0 = arith.constant 0 : index
    %0 = vector.load %arg1[%c0, %c0_0] : memref<2x16xf32, #tpu.memory_space<vmem>>, vector<2x16xf32>
    %c0_1 = arith.constant 0 : index
    %c0_2 = arith.constant 0 : index
    %1 = vector.load %arg2[%c0_1, %c0_2] : memref<16x32xf32, #tpu.memory_space<vmem>>, vector<16x32xf32>
    %c0_3 = arith.constant 0 : index
    %c0_4 = arith.constant 0 : index
    %2 = vector.load %arg3[%c0_3, %c0_4] : memref<1x32xf32, #tpu.memory_space<vmem>>, vector<1x32xf32>
    %cst = arith.constant dense<0.000000e+00> : vector<2x32xf32>
    %3 = tpu.matmul %0, %1, %cst {dimension_numbers = #tpu.dot_dimension_numbers<[1], [0], [0], [1], [0, 0, 1, 1], [], []>} : vector<2x16xf32>, vector<16x32xf32>, vector<2x32xf32> -> vector<2x32xf32>
    %4 = vector.broadcast %2 : vector<1x32xf32> to vector<2x32xf32>
    %5 = arith.addf %3, %4 : vector<2x32xf32>
    %cst_5 = arith.constant 0.000000e+00 : f32
    %6 = vector.broadcast %cst_5 : f32 to vector<2x32xf32>
    %7 = arith.maximumf %5, %6 : vector<2x32xf32>
    %c0_6 = arith.constant 0 : index
    %c0_7 = arith.constant 0 : index
    %8 = vector.load %arg4[%c0_6, %c0_7] : memref<32x32xf32, #tpu.memory_space<vmem>>, vector<32x32xf32>
    %c0_8 = arith.constant 0 : index
    %c0_9 = arith.constant 0 : index
    %9 = vector.load %arg5[%c0_8, %c0_9] : memref<1x32xf32, #tpu.memory_space<vmem>>, vector<1x32xf32>
    %cst_10 = arith.constant dense<0.000000e+00> : vector<2x32xf32>
    %10 = tpu.matmul %7, %8, %cst_10 {dimension_numbers = #tpu.dot_dimension_numbers<[1], [0], [0], [1], [0, 0, 1, 1], [], []>} : vector<2x32xf32>, vector<32x32xf32>, vector<2x32xf32> -> vector<2x32xf32>
    %11 = vector.broadcast %9 : vector<1x32xf32> to vector<2x32xf32>
    %12 = arith.addf %10, %11 : vector<2x32xf32>
    %cst_11 = arith.constant 0.000000e+00 : f32
    %13 = vector.broadcast %cst_11 : f32 to vector<2x32xf32>
    %14 = arith.maximumf %12, %13 : vector<2x32xf32>
    %c0_12 = arith.constant 0 : index
    %c0_13 = arith.constant 0 : index
    %15 = vector.load %arg6[%c0_12, %c0_13] : memref<2x32xf32, #tpu.memory_space<vmem>>, vector<2x32xf32>
    tpu.vector_store %arg6[%c0_12, %c0_13], %14 {strides = array<i32>} : memref<2x32xf32, #tpu.memory_space<vmem>>, vector<2x32xf32>,
    return
  }
  func.func @transform_0(%arg0: i32) -> (i32, i32) {
    %c0_i32 = arith.constant 0 : i32
    %c0_i32_0 = arith.constant 0 : i32
    return %arg0, %c0_i32 : i32, i32
  }
  func.func @transform_1(%arg0: i32) -> (i32, i32) {
    %c0_i32 = arith.constant 0 : i32
    %c0_i32_0 = arith.constant 0 : i32
    %c0_i32_1 = arith.constant 0 : i32
    return %c0_i32, %c0_i32_0 : i32, i32
  }
  func.func @transform_2(%arg0: i32) -> (i32, i32) {
    %c0_i32 = arith.constant 0 : i32
    %c0_i32_0 = arith.constant 0 : i32
    %c0_i32_1 = arith.constant 0 : i32
    return %c0_i32, %c0_i32_0 : i32, i32
  }
  func.func @transform_3(%arg0: i32) -> (i32, i32) {
    %c0_i32 = arith.constant 0 : i32
    %c0_i32_0 = arith.constant 0 : i32
    %c0_i32_1 = arith.constant 0 : i32
    return %c0_i32, %c0_i32_0 : i32, i32
  }
  func.func @transform_4(%arg0: i32) -> (i32, i32) {
    %c0_i32 = arith.constant 0 : i32
    %c0_i32_0 = arith.constant 0 : i32
    %c0_i32_1 = arith.constant 0 : i32
    return %c0_i32, %c0_i32_0 : i32, i32
  }
  func.func @transform_5(%arg0: i32) -> (i32, i32) {
    %c0_i32 = arith.constant 0 : i32
    %c0_i32_0 = arith.constant 0 : i32
    return %arg0, %c0_i32 : i32, i32
  }
}

</mosaic_0001>

<llo_original>
// kernel: mlp_base_forward.1
$region0: #{mlp_base_forward.1}
  #allocation0 [shape = 'u32[]', space=smem, size = 0x4, offset = 0x4, fixed_abs, tag = 'smem constant byte address 0x4 - core index']
  #allocation1 [shape = 'u32[144,128]{1,0:T(1,128)}', space=vmem, size = 0x12000, scoped, tag = 'internal scratch']
  %s0 = inlined_call_operand.hbm [shape: f32[2,16], index: 0, kind: input, shape index: {}]
  %s1 = inlined_call_operand.hbm [shape: f32[16,32], index: 1, kind: input, shape index: {}]
  %s2 = inlined_call_operand.vmem [shape: f32[1,32], index: 2, kind: input, shape index: {}]
  %s3 = inlined_call_operand.hbm [shape: f32[32,32], index: 3, kind: input, shape index: {}]
  %s4 = inlined_call_operand.vmem [shape: f32[1,32], index: 4, kind: input, shape index: {}]
  %s5 = inlined_call_operand.hbm [shape: f32[2,32], index: 5, kind: output, shape index: {}]
  %s6 = sld [smem:[#allocation0]]
  $region42: #{mlp_base_forward.1} parent=0
    _
  %s8 = ssub.s32 1, %s6
  %s9 = scalar_select 0, %s8, %s6
  $region1: #{mlp_base_forward.1} parent=0
    #allocation2 [shape = 'u8[1024]{0}', space=vmem, size = 0x400, scoped, tag = 'input window, operand 0, single buffered']
    #allocation3 [shape = 's32[1]{0}', space=sflag, size = 0x4, scoped, tag = 'scoped memory for mlp_base_forward.1']
    #allocation4 [shape = 's32[1]{0}', space=sflag, size = 0x4, scoped, tag = 'scoped memory for mlp_base_forward.1']
    #allocation5 [shape = 'u8[8192]{0}', space=vmem, size = 0x2000, scoped, tag = 'input window, operand 1, single buffered']
    #allocation6 [shape = 's32[1]{0}', space=sflag, size = 0x4, scoped, tag = 'scoped memory for mlp_base_forward.1']
    #allocation7 [shape = 'u8[16384]{0}', space=vmem, size = 0x4000, scoped, tag = 'input window, operand 3, single buffered']
    #allocation8 [shape = 'u8[1024]{0}', space=vmem, size = 0x400, scoped, tag = 'output window, operand 0, single buffered']
    %10 = vsyncpa [#allocation3], 0
    %11 = vsyncpa [#allocation6], 0
    %12 = vsyncpa [#allocation4], 0
    // Predicated region
    $region2: #{mlp_base_forward.1} parent=1 // pred_check
      _
    $region3: #{mlp_base_forward.1} parent=1 // pred_check_branch
      %14 = sbr.rel (0) target = $region5
    $region4: #{mlp_base_forward.1} parent=1 // pred_region
      %s16 = ssub.s32 32, 32
      %17 = vsyncadd [#allocation3], %s16
      %s19 = sshll.u32 [#allocation2], 4
      %s20 = int_to_ptr.vmem [resolvable:$true] %s19
      %22 = dma.hbm_to_vmem [thread:$0]  %s0, 32, %s20, [#allocation3]
    $region5: #{mlp_base_forward.1} parent=1 // pred_fallthru
      _
    // Predicated region
    $region6: #{mlp_base_forward.1} parent=1 // pred_check
      _
    $region7: #{mlp_base_forward.1} parent=1 // pred_check_branch
      %24 = sbr.rel (0) target = $region9
    $region8: #{mlp_base_forward.1} parent=1 // pred_region
      %s26 = ssub.s32 256, 256
      %27 = vsyncadd [#allocation6], %s26
      %s28 = sshll.u32 [#allocation5], 4
      %s29 = int_to_ptr.vmem [resolvable:$true] %s28
      %34 = dma.hbm_to_vmem [thread:$0]  %s1, 256, %s29, [#allocation6], 128, 128, 8
    $region9: #{mlp_base_forward.1} parent=1 // pred_fallthru
      _
    // Predicated region
    $region10: #{mlp_base_forward.1} parent=1 // pred_check
      _
    $region11: #{mlp_base_forward.1} parent=1 // pred_check_branch
      %36 = sbr.rel (0) target = $region13
    $region12: #{mlp_base_forward.1} parent=1 // pred_region
      _
    $region13: #{mlp_base_forward.1} parent=1 // pred_fallthru
      _
    // Predicated region
    $region14: #{mlp_base_forward.1} parent=1 // pred_check
      _
    $region15: #{mlp_base_forward.1} parent=1 // pred_check_branch
      %38 = sbr.rel (0) target = $region17
    $region16: #{mlp_base_forward.1} parent=1 // pred_region
      %s40 = ssub.s32 512, 512
      %41 = vsyncadd [#allocation6], %s40
      %s42 = sshll.u32 [#allocation7], 4
      %s43 = int_to_ptr.vmem [resolvable:$true] %s42
      %48 = dma.hbm_to_vmem [thread:$0]  %s3, 512, %s43, [#allocation6], 128, 128, 8
    $region17: #{mlp_base_forward.1} parent=1 // pred_fallthru
      _
    // Predicated region
    $region18: #{mlp_base_forward.1} parent=1 // pred_check
      _
    $region19: #{mlp_base_forward.1} parent=1 // pred_check_branch
      %50 = sbr.rel (0) target = $region21
    $region20: #{mlp_base_forward.1} parent=1 // pred_region
      _
    $region21: #{mlp_base_forward.1} parent=1 // pred_fallthru
      _
    // Predicated region
    $region22: #{mlp_base_forward.1} parent=1 // pred_check
      _
    $region23: #{mlp_base_forward.1} parent=1 // pred_check_branch
      %52 = sbr.rel (0) target = $region25
    $region24: #{mlp_base_forward.1} parent=1 // pred_region
      %53 = dma.done [#allocation3], 32
    $region25: #{mlp_base_forward.1} parent=1 // pred_fallthru
      _
    // Predicated region
    $region26: #{mlp_base_forward.1} parent=1 // pred_check
      _
    $region27: #{mlp_base_forward.1} parent=1 // pred_check_branch
      %55 = sbr.rel (0) target = $region29
    $region28: #{mlp_base_forward.1} parent=1 // pred_region
      %56 = dma.done [#allocation6], 256
    $region29: #{mlp_base_forward.1} parent=1 // pred_fallthru
      _
    // Predicated region
    $region30: #{mlp_base_forward.1} parent=1 // pred_check
      _
    $region31: #{mlp_base_forward.1} parent=1 // pred_check_branch
      %58 = sbr.rel (0) target = $region33
    $region32: #{mlp_base_forward.1} parent=1 // pred_region
      %59 = dma.done [#allocation6], 512
    $region33: #{mlp_base_forward.1} parent=1 // pred_fallthru
      _
    %v60 = vld [vmem:[#allocation2] sm:$0x3]
    %v61 = vld [vmem:[#allocation5] sm:$0xff]
    %v62 = vld [vmem:[#allocation5 + $0x8] sm:$0xff]
    %v63 = vld [vmem:[%s2] sm:$0x1]
    %v65 = vlaneseq
    %v66 = vshrl.u32 %v65, 7
    %v67 = vsub.s32 0, %v66
    %v68 = vrot.slane %v63, %v67
    %vm70 = vcmask 130048
    %v72 = vsel %vm70, %v60, 0
    %74 = vmatprep.subr.mxu0 0.0
    %75 = vmatpush1.msra.mxu0 %v61
    %76 = vmatprep.subr.mxu0 0.0
    %77 = vmatpush1.msra.mxu0 %v62
    %78 = vmatprep.subr.mxu0 0.0
    %79 = vmatpush1.msra.mxu0 0.0
    %80 = vmatprep.subr.mxu0 0.0
    %81 = vmatpush1.msra.mxu0 0.0
    %82 = vmatprep.subr.mxu0 0.0
    %83 = vmatpush1.msra.mxu0 0.0
    %84 = vmatprep.subr.mxu0 0.0
    %85 = vmatpush1.msra.mxu0 0.0
    %86 = vmatprep.subr.mxu0 0.0
    %87 = vmatpush1.msra.mxu0 0.0
    %88 = vmatprep.subr.mxu0 0.0
    %89 = vmatpush1.msra.mxu0 0.0
    %90 = vmatprep.subr.mxu0 0.0
    %91 = vmatpush1.msra.mxu0 0.0
    %92 = vmatprep.subr.mxu0 0.0
    %93 = vmatpush1.msra.mxu0 0.0
    %94 = vmatprep.subr.mxu0 0.0
    %95 = vmatpush1.msra.mxu0 0.0
    %96 = vmatprep.subr.mxu0 0.0
    %97 = vmatpush1.msra.mxu0 0.0
    %98 = vmatprep.subr.mxu0 0.0
    %99 = vmatpush1.msra.mxu0 0.0
    %100 = vmatprep.subr.mxu0 0.0
    %101 = vmatpush1.msra.mxu0 0.0
    %102 = vmatprep.subr.mxu0 0.0
    %103 = vmatpush1.msra.mxu0 0.0
    %104 = vmatprep.subr.mxu0 0.0
    %105 = vmatpush1.msra.mxu0 0.0
    %106 = vmatprep.subr.mxu0 0.0
    %107 = vmatpush1.msra.mxu0 0.0
    %108 = vmatprep.subr.mxu0 0.0
    %109 = vmatpush1.msra.mxu0 0.0
    %110 = vmatprep.subr.mxu0 0.0
    %111 = vmatpush1.msra.mxu0 0.0
    %112 = vmatprep.subr.mxu0 0.0
    %113 = vmatpush1.msra.mxu0 0.0
    %114 = vmatprep.subr.mxu0 0.0
    %115 = vmatpush1.msra.mxu0 0.0
    %116 = vmatprep.subr.mxu0 0.0
    %117 = vmatpush1.msra.mxu0 0.0
    %118 = vmatprep.subr.mxu0 0.0
    %119 = vmatpush1.msra.mxu0 0.0
    %120 = vmatprep.subr.mxu0 0.0
    %121 = vmatpush1.msra.mxu0 0.0
    %122 = vmatprep.subr.mxu0 0.0
    %123 = vmatpush1.msra.mxu0 0.0
    %124 = vmatprep.subr.mxu0 0.0
    %125 = vmatpush1.msra.mxu0 0.0
    %126 = vmatprep.subr.mxu0 0.0
    %127 = vmatpush1.msra.mxu0 0.0
    %128 = vmatprep.subr.mxu0 0.0
    %129 = vmatpush1.msra.mxu0 0.0
    %130 = vmatprep.subr.mxu0 0.0
    %131 = vmatpush1.msra.mxu0 0.0
    %132 = vmatprep.subr.mxu0 0.0
    %133 = vmatpush1.msra.mxu0 0.0
    %134 = vmatprep.subr.mxu0 0.0
    %135 = vmatpush1.msra.mxu0 0.0
    %136 = vmatprep.subr.mxu0 0.0
    %137 = vmatpush1.msra.mxu0 0.0
    %138 = vmatprep.mubr.f32.mxu0 0.0
    %139 = vmatmul.mubr.f32.gmra.mrb[0].mxu0 %v72
    %v140 = vpop.f32.mrb[0].mxu0
    %v141 = vadd.f32 %v68, %v140
    %v142 = vpop.f32.mrb[0].mxu0
    %143 = vdwg.mxu0
    %v144 = vmax.f32 %v141, 0.0
    %v145 = vld [vmem:[#allocation7] sm:$0xff]
    %v146 = vld [vmem:[#allocation7 + $0x8] sm:$0xff]
    %v147 = vld [vmem:[#allocation7 + $0x10] sm:$0xff]
    %v148 = vld [vmem:[#allocation7 + $0x18] sm:$0xff]
    %v149 = vld [vmem:[%s4] sm:$0x1]
    %v151 = vlaneseq
    %v152 = vshrl.u32 %v151, 7
    %v153 = vsub.s32 0, %v152
    %v154 = vrot.slane %v149, %v153
    %vm156 = vcmask 261120
    %v158 = vsel %vm156, %v144, 0
    %160 = vmatprep.subr.mxu0 0.0
    %161 = vmatpush1.msra.mxu0 %v145
    %162 = vmatprep.subr.mxu0 0.0
    %163 = vmatpush1.msra.mxu0 %v146
    %164 = vmatprep.subr.mxu0 0.0
    %165 = vmatpush1.msra.mxu0 %v147
    %166 = vmatprep.subr.mxu0 0.0
    %167 = vmatpush1.msra.mxu0 %v148
    %168 = vmatprep.subr.mxu0 0.0
    %169 = vmatpush1.msra.mxu0 0.0
    %170 = vmatprep.subr.mxu0 0.0
    %171 = vmatpush1.msra.mxu0 0.0
    %172 = vmatprep.subr.mxu0 0.0
    %173 = vmatpush1.msra.mxu0 0.0
    %174 = vmatprep.subr.mxu0 0.0
    %175 = vmatpush1.msra.mxu0 0.0
    %176 = vmatprep.subr.mxu0 0.0
    %177 = vmatpush1.msra.mxu0 0.0
    %178 = vmatprep.subr.mxu0 0.0
    %179 = vmatpush1.msra.mxu0 0.0
    %180 = vmatprep.subr.mxu0 0.0
    %181 = vmatpush1.msra.mxu0 0.0
    %182 = vmatprep.subr.mxu0 0.0
    %183 = vmatpush1.msra.mxu0 0.0
    %184 = vmatprep.subr.mxu0 0.0
    %185 = vmatpush1.msra.mxu0 0.0
    %186 = vmatprep.subr.mxu0 0.0
    %187 = vmatpush1.msra.mxu0 0.0
    %188 = vmatprep.subr.mxu0 0.0
    %189 = vmatpush1.msra.mxu0 0.0
    %190 = vmatprep.subr.mxu0 0.0
    %191 = vmatpush1.msra.mxu0 0.0
    %192 = vmatprep.subr.mxu0 0.0
    %193 = vmatpush1.msra.mxu0 0.0
    %194 = vmatprep.subr.mxu0 0.0
    %195 = vmatpush1.msra.mxu0 0.0
    %196 = vmatprep.subr.mxu0 0.0
    %197 = vmatpush1.msra.mxu0 0.0
    %198 = vmatprep.subr.mxu0 0.0
    %199 = vmatpush1.msra.mxu0 0.0
    %200 = vmatprep.subr.mxu0 0.0
    %201 = vmatpush1.msra.mxu0 0.0
    %202 = vmatprep.subr.mxu0 0.0
    %203 = vmatpush1.msra.mxu0 0.0
    %204 = vmatprep.subr.mxu0 0.0
    %205 = vmatpush1.msra.mxu0 0.0
    %206 = vmatprep.subr.mxu0 0.0
    %207 = vmatpush1.msra.mxu0 0.0
    %208 = vmatprep.subr.mxu0 0.0
    %209 = vmatpush1.msra.mxu0 0.0
    %210 = vmatprep.subr.mxu0 0.0
    %211 = vmatpush1.msra.mxu0 0.0
    %212 = vmatprep.subr.mxu0 0.0
    %213 = vmatpush1.msra.mxu0 0.0
    %214 = vmatprep.subr.mxu0 0.0
    %215 = vmatpush1.msra.mxu0 0.0
    %216 = vmatprep.subr.mxu0 0.0
    %217 = vmatpush1.msra.mxu0 0.0
    %218 = vmatprep.subr.mxu0 0.0
    %219 = vmatpush1.msra.mxu0 0.0
    %220 = vmatprep.subr.mxu0 0.0
    %221 = vmatpush1.msra.mxu0 0.0
    %222 = vmatprep.subr.mxu0 0.0
    %223 = vmatpush1.msra.mxu0 0.0
    %224 = vmatprep.mubr.f32.mxu0 0.0
    %225 = vmatmul.mubr.f32.gmra.mrb[0].mxu0 %v158
    %v226 = vpop.f32.mrb[0].mxu0
    %v227 = vadd.f32 %v154, %v226
    %v228 = vpop.f32.mrb[0].mxu0
    %229 = vdwg.mxu0
    %v230 = vmax.f32 %v227, 0.0
    %vm231 = vcmask 254976
    %232 = vst.msk [vmem:[#allocation8] sm:$0x3] %vm231, %v230
    // Predicated region
    $region34: #{mlp_base_forward.1} parent=1 // pred_check
      _
    $region35: #{mlp_base_forward.1} parent=1 // pred_check_branch
      %234 = sbr.rel (0) target = $region37
    $region36: #{mlp_base_forward.1} parent=1 // pred_region
      %s236 = ssub.s32 32, 32
      %237 = vsyncadd [#allocation4], %s236
      %s239 = sshll.u32 [#allocation8], 4
      %s240 = int_to_ptr.vmem [resolvable:$true] %s239
      %242 = dma.vmem_to_hbm [thread:$0]  %s240, 32, %s5, [#allocation4]
    $region37: #{mlp_base_forward.1} parent=1 // pred_fallthru
      _
    // Predicated region
    $region38: #{mlp_base_forward.1} parent=1 // pred_check
      _
    $region39: #{mlp_base_forward.1} parent=1 // pred_check_branch
      %244 = sbr.rel (0) target = $region41
    $region40: #{mlp_base_forward.1} parent=1 // pred_region
      %245 = dma.done [#allocation4], 32
    $region41: #{mlp_base_forward.1} parent=1 // pred_fallthru
      _
    %246 = vsyncpa [#allocation3], 1
    %247 = vsyncpa [#allocation6], 1
    %248 = vsyncpa [#allocation4], 1

</llo_original>
